<compile_context>
chip_gen: v7x
topology: tpu7x:2x2x1
jax: 0.10.0
libtpu: 0.0.40
codegen_flags: <defaults>
</compile_context>

<pallas_src>
import functools

import jax
import jax.numpy as jnp
from jax.experimental import pallas as pl
from jax.experimental.pallas import tpu as pltpu


def _round_up(x, m):
    return ((x + m - 1) // m) * m


def _linear_kernel(x_ref, w_ref, b_ref, o_ref):
    # x_ref: (tm, tk) f32 activations      w_ref: (tk, tn) bf16 weight, (K, N) layout
    # b_ref: (1, tn)  f32 bias             o_ref: (tm, tn) f32 output, resident across K
    k = pl.program_id(2)

    @pl.when(k == 0)
    def _():
        o_ref[...] = jnp.broadcast_to(b_ref[...], o_ref.shape)

    o_ref[...] += jnp.dot(
        x_ref[...].astype(jnp.bfloat16),      # bf16 MXU operands,
        w_ref[...],                           # f32 accumulation
        preferred_element_type=jnp.float32,
    )


def _forward_impl(x, w_p, b_p, *, out_features, in_features, N, K, tn, tk):
    B = x.shape[0]
    tm = min(512, _round_up(B, 8))            # keep weight re-streaming (grid_M) at 1-2
    M = _round_up(B, tm)

    # Keep at least two (M, N) blocks when cheap so v7x's second TensorCore works.
    if (M // tm) * (N // tn) == 1 and N >= 256:
        tn = N // 2                           # N is a multiple of 256 here -> still 128-dense

    x_p = jnp.pad(x, ((0, M - B), (0, K - in_features)))   # zeros are inert in the dot

    grid = (M // tm, N // tn, K // tk)

    # Double-buffered footprint (x f32, w bf16, out f32, bias) + bf16-cast temp.
    footprint = 2 * (tm * tk * 4 + tk * tn * 2 + tm * tn * 4 + tn * 4) + tm * tk * 2
    vmem_limit = int(min(48 << 20, max(32 << 20, footprint + (8 << 20))))

    out_p = pl.pallas_call(
        _linear_kernel,
        out_shape=jax.ShapeDtypeStruct((M, N), jnp.float32),
        grid_spec=pltpu.PrefetchScalarGridSpec(
            num_scalar_prefetch=0,
            grid=grid,
            in_specs=[
                pl.BlockSpec((tm, tk), lambda i, j, k: (i, k)),   # x
                pl.BlockSpec((tk, tn), lambda i, j, k: (k, j)),   # weight (K, N) bf16
                pl.BlockSpec((1, tn), lambda i, j, k: (0, j)),    # bias
            ],
            out_specs=pl.BlockSpec((tm, tn), lambda i, j, k: (i, j)),
        ),
        compiler_params=pltpu.CompilerParams(
            dimension_semantics=("parallel", "parallel", "arbitrary"),
            vmem_limit_bytes=vmem_limit,
        ),
    )(x_p, w_p, b_p)

    return out_p[:B, :out_features]


def make_linear_forward(weight, bias):
    """Build a jitted forward for torch.nn.Linear(In, Out): y = x @ W^T + b.

    All parameter padding / layout / dtype work happens once here (not per call):
      weight (Out, In) f32 -> (K, N) bf16, zero-padded + transposed to canonical RHS.
      bias   (Out,)    f32 -> (1, N) f32, zero-padded.
    """
    out_features, in_features = weight.shape

    # N tiles: 256-multiples fill the 256x256 MXU on v6e/v7x; 128 avoids gross
    # padding for tiny Out and is still full-width for v5e's 128x128 MXU.
    tn = 256 if out_features > 128 else 128
    N = _round_up(out_features, tn)

    # K tiles: full-K when it fits comfortably (removes the reduction grid axis
    # for small/medium In); otherwise 2048-deep tiles with K padded to match.
    K128 = _round_up(in_features, 128)
    if K128 <= 2048:
        tk, K = K128, K128
    else:
        tk, K = 2048, _round_up(in_features, 2048)

    w_p = jnp.pad(weight, ((0, N - out_features), (0, K - in_features)))
    w_p = w_p.T.astype(jnp.bfloat16)                                    # (K, N) bf16, once
    b_p = jnp.pad(bias, (0, N - out_features)).astype(jnp.float32).reshape(1, N)

    fwd = jax.jit(functools.partial(
        _forward_impl,
        out_features=out_features, in_features=in_features,
        N=N, K=K, tn=tn, tk=tk))
    return lambda x: fwd(x, w_p, b_p)


if __name__ == "__main__":
    key = jax.random.PRNGKey(0)
    kx, kw, kb, kx2, kw2, kb2 = jax.random.split(key, 6)

    # Small shapes consistent with the module: inputSize=32, outputSize=16, batch=8.
    batch, in_features, out_features = 8, 32, 16
    bound = 1.0 / (in_features ** 0.5)
    weight = jax.random.uniform(
        kw, (out_features, in_features), jnp.float32, -bound, bound)
    bias = jax.random.uniform(
        kb, (out_features,), jnp.float32, -bound, bound)
    x = jax.random.normal(kx, (batch, in_features), jnp.float32)

    forward = make_linear_forward(weight, bias)
    out = jax.block_until_ready(forward(x))
    ref = x @ weight.T + bias
    assert out.shape == (batch, out_features)
    # bf16 operands / f32 accumulation -> relaxed tolerance vs. the f32 reference.
    assert jnp.allclose(out, ref, atol=3e-2, rtol=3e-2), \
        float(jnp.max(jnp.abs(out - ref)))

    # Second case: non-trivial padding, multi-block (M, N) grid, full-K single step.
    b2, in2, out2 = 200, 640, 272
    bound2 = 1.0 / (in2 ** 0.5)
    w2 = jax.random.uniform(kw2, (out2, in2), jnp.float32, -bound2, bound2)
    bb2 = jax.random.uniform(kb2, (out2,), jnp.float32, -bound2, bound2)
    x2 = jax.random.normal(kx2, (b2, in2), jnp.float32)

    forward2 = make_linear_forward(w2, bb2)
    out2_arr = jax.block_until_ready(forward2(x2))
    ref2 = x2 @ w2.T + bb2
    assert out2_arr.shape == (b2, out2)
    assert jnp.allclose(out2_arr, ref2, atol=3e-2, rtol=3e-2), \
        float(jnp.max(jnp.abs(out2_arr - ref2)))

    print("KERNEL_OK")
</pallas_src>

<mosaic_0001>
module attributes {stable_mosaic.version = 11 : i64} {
  func.func @_linear_kernel(%arg0: i32, %arg1: i32, %arg2: i32, %arg3: memref<8x128xf32, #tpu.memory_space<vmem>>, %arg4: memref<128x128xbf16, #tpu.memory_space<vmem>>, %arg5: memref<1x128xf32, #tpu.memory_space<vmem>>, %arg6: memref<8x128xf32, #tpu.memory_space<vmem>>) attributes {dimension_semantics = [#tpu.dimension_semantics<parallel>, #tpu.dimension_semantics<parallel>, #tpu.dimension_semantics<arbitrary>], iteration_bounds = array<i64: 1, 1, 1>, scalar_prefetch = 0 : i64, scratch_operands = 0 : i64, tpu.core_type = #tpu.core_type<tc>, window_params = [{transform_indices = @transform_0, window_bounds = array<i64: 8, 128>}, {transform_indices = @transform_1, window_bounds = array<i64: 128, 128>}, {transform_indices = @transform_2, window_bounds = array<i64: 1, 128>}, {transform_indices = @transform_3, window_bounds = array<i64: 8, 128>}]} {
    %c0_i32 = arith.constant 0 : i32
    %0 = arith.cmpi eq, %arg2, %c0_i32 : i32
    %1 = arith.extui %0 : i1 to i32
    %c0_i32_0 = arith.constant 0 : i32
    %2 = arith.cmpi ne, %1, %c0_i32_0 : i32
    scf.if %2 {
      %c0_8 = arith.constant 0 : index
      %c0_9 = arith.constant 0 : index
      %10 = vector.load %arg5[%c0_8, %c0_9] : memref<1x128xf32, #tpu.memory_space<vmem>>, vector<1x128xf32>
      %11 = vector.shape_cast %10 : vector<1x128xf32> to vector<1x128xf32>
      %12 = vector.broadcast %11 : vector<1x128xf32> to vector<8x128xf32>
      %c0_10 = arith.constant 0 : index
      %c0_11 = arith.constant 0 : index
      %13 = vector.load %arg6[%c0_10, %c0_11] : memref<8x128xf32, #tpu.memory_space<vmem>>, vector<8x128xf32>
      tpu.vector_store %arg6[%c0_10, %c0_11], %12 {strides = array<i32>} : memref<8x128xf32, #tpu.memory_space<vmem>>, vector<8x128xf32>,
    } else {
    }
    %c0 = arith.constant 0 : index
    %c0_1 = arith.constant 0 : index
    %3 = vector.load %arg6[%c0, %c0_1] : memref<8x128xf32, #tpu.memory_space<vmem>>, vector<8x128xf32>
    %c0_2 = arith.constant 0 : index
    %c0_3 = arith.constant 0 : index
    %4 = vector.load %arg3[%c0_2, %c0_3] : memref<8x128xf32, #tpu.memory_space<vmem>>, vector<8x128xf32>
    %5 = arith.truncf %4 : vector<8x128xf32> to vector<8x128xbf16>
    %c0_4 = arith.constant 0 : index
    %c0_5 = arith.constant 0 : index
    %6 = vector.load %arg4[%c0_4, %c0_5] : memref<128x128xbf16, #tpu.memory_space<vmem>>, vector<128x128xbf16>
    %cst = arith.constant dense<0.000000e+00> : vector<8x128xf32>
    %7 = tpu.matmul %5, %6, %cst {dimension_numbers = #tpu.dot_dimension_numbers<[1], [0], [0], [1], [0, 0, 1, 1], [], []>} : vector<8x128xbf16>, vector<128x128xbf16>, vector<8x128xf32> -> vector<8x128xf32>
    %8 = arith.addf %3, %7 : vector<8x128xf32>
    %c0_6 = arith.constant 0 : index
    %c0_7 = arith.constant 0 : index
    %9 = vector.load %arg6[%c0_6, %c0_7] : memref<8x128xf32, #tpu.memory_space<vmem>>, vector<8x128xf32>
    tpu.vector_store %arg6[%c0_6, %c0_7], %8 {strides = array<i32>} : memref<8x128xf32, #tpu.memory_space<vmem>>, vector<8x128xf32>,
    return
  }
  func.func @transform_0(%arg0: i32, %arg1: i32, %arg2: i32) -> (i32, i32) {
    %c0_i32 = arith.constant 0 : i32
    return %arg0, %arg2 : i32, i32
  }
  func.func @transform_1(%arg0: i32, %arg1: i32, %arg2: i32) -> (i32, i32) {
    %c0_i32 = arith.constant 0 : i32
    return %arg2, %arg1 : i32, i32
  }
  func.func @transform_2(%arg0: i32, %arg1: i32, %arg2: i32) -> (i32, i32) {
    %c0_i32 = arith.constant 0 : i32
    %c0_i32_0 = arith.constant 0 : i32
    return %c0_i32, %arg1 : i32, i32
  }
  func.func @transform_3(%arg0: i32, %arg1: i32, %arg2: i32) -> (i32, i32) {
    %c0_i32 = arith.constant 0 : i32
    return %arg0, %arg1 : i32, i32
  }
}

</mosaic_0001>

<llo_original>
// kernel: _forward_impl.1
$region0: #{_forward_impl.1}
  #allocation0 [shape = 'u32[]', space=smem, size = 0x4, offset = 0x4, fixed_abs, tag = 'smem constant byte address 0x4 - core index']
  #allocation1 [shape = 'u32[144,128]{1,0:T(1,128)}', space=vmem, size = 0x12000, scoped, tag = 'internal scratch']
  %s0 = inlined_call_operand.vmem [shape: f32[8,128], index: 0, kind: input, shape index: {}]
  %s1 = inlined_call_operand.hbm [shape: bf16[128,128], index: 1, kind: input, shape index: {}]
  %s2 = inlined_call_operand.vmem [shape: f32[1,128], index: 2, kind: input, shape index: {}]
  %s3 = inlined_call_operand.hbm [shape: f32[8,128], index: 3, kind: output, shape index: {}]
  %s4 = sld [smem:[#allocation0]]
  $region30: #{_forward_impl.1} parent=0
    _
  %s6 = ssub.s32 1, %s4
  %s7 = scalar_select 0, %s6, %s4
  $region1: #{_forward_impl.1} parent=0
    #allocation2 [shape = 'u8[32768]{0}', space=vmem, size = 0x8000, scoped, tag = 'input window, operand 1, single buffered']
    #allocation3 [shape = 's32[1]{0}', space=sflag, size = 0x4, scoped, tag = 'scoped memory for _forward_impl.1']
    #allocation4 [shape = 's32[1]{0}', space=sflag, size = 0x4, scoped, tag = 'scoped memory for _forward_impl.1']
    #allocation5 [shape = 'u8[4096]{0}', space=vmem, size = 0x1000, scoped, tag = 'output window, operand 0, single buffered']
    %8 = vsyncpa [#allocation3], 0
    %9 = vsyncpa [#allocation4], 0
    // Predicated region
    $region2: #{_forward_impl.1} parent=1 // pred_check
      _
    $region3: #{_forward_impl.1} parent=1 // pred_check_branch
      %11 = sbr.rel (0) target = $region5
    $region4: #{_forward_impl.1} parent=1 // pred_region
      _
    $region5: #{_forward_impl.1} parent=1 // pred_fallthru
      _
    // Predicated region
    $region6: #{_forward_impl.1} parent=1 // pred_check
      _
    $region7: #{_forward_impl.1} parent=1 // pred_check_branch
      %13 = sbr.rel (0) target = $region9
    $region8: #{_forward_impl.1} parent=1 // pred_region
      %s15 = ssub.s32 1024, 1024
      %16 = vsyncadd [#allocation3], %s15
      %s17 = sshll.u32 [#allocation2], 4
      %s18 = int_to_ptr.vmem [resolvable:$true] %s17
      %23 = dma.hbm_to_vmem [thread:$0]  %s1, 1024, %s18, [#allocation3], 64, 64, 4
    $region9: #{_forward_impl.1} parent=1 // pred_fallthru
      _
    // Predicated region
    $region10: #{_forward_impl.1} parent=1 // pred_check
      _
    $region11: #{_forward_impl.1} parent=1 // pred_check_branch
      %25 = sbr.rel (0) target = $region13
    $region12: #{_forward_impl.1} parent=1 // pred_region
      _
    $region13: #{_forward_impl.1} parent=1 // pred_fallthru
      _
    // Predicated region
    $region14: #{_forward_impl.1} parent=1 // pred_check
      _
    $region15: #{_forward_impl.1} parent=1 // pred_check_branch
      %27 = sbr.rel (0) target = $region17
    $region16: #{_forward_impl.1} parent=1 // pred_region
      %28 = dma.done [#allocation3], 1024
    $region17: #{_forward_impl.1} parent=1 // pred_fallthru
      _
    %p30 = scmp.eq.s32.totalorder 0, 0
    // Predicated region
    $region18: #{_forward_impl.1} parent=1 // pred_check
      %p31 = pneg %p30
    $region19: #{_forward_impl.1} parent=1 // pred_check_branch
      %33 = sbr.rel (%p31) target = $region21
    $region20: #{_forward_impl.1} parent=1 // pred_region
      %v34 = vld [vmem:[%s2] sm:$0x1]
      %v36 = vlaneseq
      %v37 = vshrl.u32 %v36, 7
      %v38 = vsub.s32 0, %v37
      %v39 = vrot.slane %v34, %v38
      %41 = vst [vmem:[#allocation5] sm:$0xff] %v39
    $region21: #{_forward_impl.1} parent=1 // pred_fallthru
      _
    %v42 = vld [vmem:[#allocation5] sm:$0xff]
    %v43 = vld [vmem:[%s0] sm:$0xff]
    %v44 = vpack.c.bf16 %v43, %v43
    %v45 = vld [vmem:[#allocation2] sm:$0xf]
    %v46 = vld [vmem:[#allocation2 + $0x4] sm:$0xf]
    %v47 = vld [vmem:[#allocation2 + $0x8] sm:$0xf]
    %v48 = vld [vmem:[#allocation2 + $0xc] sm:$0xf]
    %v49 = vld [vmem:[#allocation2 + $0x10] sm:$0xf]
    %v50 = vld [vmem:[#allocation2 + $0x14] sm:$0xf]
    %v51 = vld [vmem:[#allocation2 + $0x18] sm:$0xf]
    %v52 = vld [vmem:[#allocation2 + $0x1c] sm:$0xf]
    %v53 = vld [vmem:[#allocation2 + $0x20] sm:$0xf]
    %v54 = vld [vmem:[#allocation2 + $0x24] sm:$0xf]
    %v55 = vld [vmem:[#allocation2 + $0x28] sm:$0xf]
    %v56 = vld [vmem:[#allocation2 + $0x2c] sm:$0xf]
    %v57 = vld [vmem:[#allocation2 + $0x30] sm:$0xf]
    %v58 = vld [vmem:[#allocation2 + $0x34] sm:$0xf]
    %v59 = vld [vmem:[#allocation2 + $0x38] sm:$0xf]
    %v60 = vld [vmem:[#allocation2 + $0x3c] sm:$0xf]
    %v77 = vunpack.c.l.b16 %v45
    %v78 = vunpack.c.l.b16 %v46
    %v79 = vunpack.c.l.b16 %v47
    %v80 = vunpack.c.l.b16 %v48
    %v81 = vunpack.c.l.b16 %v49
    %v82 = vunpack.c.l.b16 %v50
    %v83 = vunpack.c.l.b16 %v51
    %v84 = vunpack.c.l.b16 %v52
    %v85 = vunpack.c.l.b16 %v53
    %v86 = vunpack.c.l.b16 %v54
    %v87 = vunpack.c.l.b16 %v55
    %v88 = vunpack.c.l.b16 %v56
    %v89 = vunpack.c.l.b16 %v57
    %v90 = vunpack.c.l.b16 %v58
    %v91 = vunpack.c.l.b16 %v59
    %v92 = vunpack.c.l.b16 %v60
    %v93 = vpack.c.b16 %v78, %v77
    %v94 = vpack.c.b16 %v80, %v79
    %v95 = vpack.c.b16 %v82, %v81
    %v96 = vpack.c.b16 %v84, %v83
    %v97 = vpack.c.b16 %v86, %v85
    %v98 = vpack.c.b16 %v88, %v87
    %v99 = vpack.c.b16 %v90, %v89
    %v100 = vpack.c.b16 %v92, %v91
    %109 = vmatprep.subr.bf16.mxu0 0
    %110 = vmatpush1.bf16.msra.mxu0 %v93
    %111 = vmatprep.subr.bf16.mxu0 0
    %112 = vmatpush1.bf16.msra.mxu0 %v94
    %113 = vmatprep.subr.bf16.mxu0 0
    %114 = vmatpush1.bf16.msra.mxu0 %v95
    %115 = vmatprep.subr.bf16.mxu0 0
    %116 = vmatpush1.bf16.msra.mxu0 %v96
    %117 = vmatprep.subr.bf16.mxu0 0
    %118 = vmatpush1.bf16.msra.mxu0 %v97
    %119 = vmatprep.subr.bf16.mxu0 0
    %120 = vmatpush1.bf16.msra.mxu0 %v98
    %121 = vmatprep.subr.bf16.mxu0 0
    %122 = vmatpush1.bf16.msra.mxu0 %v99
    %123 = vmatprep.subr.bf16.mxu0 0
    %124 = vmatpush1.bf16.msra.mxu0 %v100
    %125 = vmatprep.subr.bf16.mxu0 0
    %126 = vmatpush1.bf16.msra.mxu0 0
    %127 = vmatprep.subr.bf16.mxu0 0
    %128 = vmatpush1.bf16.msra.mxu0 0
    %129 = vmatprep.subr.bf16.mxu0 0
    %130 = vmatpush1.bf16.msra.mxu0 0
    %131 = vmatprep.subr.bf16.mxu0 0
    %132 = vmatpush1.bf16.msra.mxu0 0
    %133 = vmatprep.subr.bf16.mxu0 0
    %134 = vmatpush1.bf16.msra.mxu0 0
    %135 = vmatprep.subr.bf16.mxu0 0
    %136 = vmatpush1.bf16.msra.mxu0 0
    %137 = vmatprep.subr.bf16.mxu0 0
    %138 = vmatpush1.bf16.msra.mxu0 0
    %139 = vmatprep.subr.bf16.mxu0 0
    %140 = vmatpush1.bf16.msra.mxu0 0
    %141 = vmatprep.mubr.bf16.mxu0 0
    %142 = vmatmul.mubr.bf16.gmra.mrb[0].mxu0 %v44
    %v143 = vpop.f32.mrb[0].mxu0
    %v144 = vadd.f32 0.0, %v143
    %v145 = vpop.f32.mrb[0].mxu0
    %v146 = vpop.f32.mrb[0].mxu0
    %v147 = vpop.f32.mrb[0].mxu0
    %148 = vdwg.mxu0
    %v149 = vadd.f32 %v42, %v144
    %150 = vst [vmem:[#allocation5] sm:$0xff] %v149
    // Predicated region
    $region22: #{_forward_impl.1} parent=1 // pred_check
      _
    $region23: #{_forward_impl.1} parent=1 // pred_check_branch
      %152 = sbr.rel (0) target = $region25
    $region24: #{_forward_impl.1} parent=1 // pred_region
      %s154 = ssub.s32 128, 128
      %155 = vsyncadd [#allocation4], %s154
      %s157 = sshll.u32 [#allocation5], 4
      %s158 = int_to_ptr.vmem [resolvable:$true] %s157
      %160 = dma.vmem_to_hbm [thread:$0]  %s158, 128, %s3, [#allocation4]
    $region25: #{_forward_impl.1} parent=1 // pred_fallthru
      _
    // Predicated region
    $region26: #{_forward_impl.1} parent=1 // pred_check
      _
    $region27: #{_forward_impl.1} parent=1 // pred_check_branch
      %162 = sbr.rel (0) target = $region29
    $region28: #{_forward_impl.1} parent=1 // pred_region
      %163 = dma.done [#allocation4], 128
    $region29: #{_forward_impl.1} parent=1 // pred_fallthru
      _
    %164 = vsyncpa [#allocation3], 1
    %165 = vsyncpa [#allocation4], 1

</llo_original>
